<compile_context>
chip_gen: v6e
topology: v6e:2x2x1
jax: 0.10.0
libtpu: 0.0.40
codegen_flags: <defaults>
</compile_context>

<pallas_src>
import functools

import numpy as np

import jax
import jax.numpy as jnp
from jax import lax
from jax.experimental import pallas as pl
from jax.experimental.pallas import tpu as pltpu


# ---------------------------------------------------------------------------
# Host-side parameter preparation.
# ---------------------------------------------------------------------------
def _stacked_banded_weight(w_hwio, W, R, shifts, dtype):
    """(K, K, Ci, Co) HWIO conv weight -> (len(shifts)*R*W*Ci, R*W*Co) matrix.

    Activations carry R image rows on the lane axis: lane = (r*W + w)*C + c.
    The kernel feeds the matmul with len(shifts) row-group shifted copies of
    the activation concatenated on the contraction axis; this matrix folds the
    kh/kw taps and the channel mixing into that single contraction.  Taps that
    fall outside the W extent are dropped (zero rows == conv zero padding in
    W); the H zero padding is realized by masking the shifted copies in-kernel.
    """
    K, _, Ci, Co = w_hwio.shape
    pad = K // 2
    w = np.asarray(w_hwio, np.float32)
    n = len(shifts)
    out = np.zeros((n, R * W * Ci, R * W * Co), np.float32)
    for si, s in enumerate(shifts):                     # row-group shift of LHS copy
        for r_dst in range(R):
            for kh in range(K):
                r_src = r_dst + (kh - pad) - s * R
                if not 0 <= r_src < R:
                    continue
                for w_dst in range(W):
                    for kw in range(K):
                        w_src = w_dst + (kw - pad)
                        if not 0 <= w_src < W:
                            continue
                        src = (r_src * W + w_src) * Ci
                        dst = (r_dst * W + w_dst) * Co
                        out[si, src:src + Ci, dst:dst + Co] = w[kh, kw]
    return jnp.asarray(out.reshape(n * R * W * Ci, R * W * Co), dtype)


def _pick_row_fold(H, W, Cin):
    """Smallest divisor R of H with R*W*Cin >= 128 (1 if already lane-dense)."""
    if W * Cin >= 128:
        return 1
    for R in range(1, H + 1):
        if H % R == 0 and R * W * Cin >= 128:
            return R
    return H


def _tpu_meta():
    kind = ""
    try:
        kind = jax.devices()[0].device_kind.lower()
    except Exception:
        pass
    single_tc = ("v5" in kind) or ("v6" in kind)        # one TensorCore per chip
    vmem_phys = 64 << 20                                # conservative (v7x per-TC)
    try:
        vmem_phys = int(pltpu.get_tpu_info().vmem_capacity_bytes)
    except Exception:
        pass
    return single_tc, vmem_phys


def _vmem_bytes(bt, G, Lin, Lg, n_shifts, mm_bytes):
    """Per-step VMEM: double-buffered x/out blocks + double-buffered stacked
    weights + a rough upper bound on live in-register/spilled intermediates."""
    blk = bt * G * Lin * 4                              # one f32 activation block
    wts = n_shifts * (Lin * Lg + Lg * Lin) * mm_bytes
    live = bt * G * (Lin + Lg) * (8 + 4 * n_shifts)
    return 2 * (2 * blk) + 2 * wts + live


def _pick_block_b(B, G, Lin, Lg, n_shifts, mm_bytes, budget, prefer_multi_step):
    best = 1
    for bt in range(1, B + 1):
        if B % bt:
            continue
        if prefer_multi_step and B > 1 and B // bt < 2:
            continue                                    # keep >=2 steps for 2-TC parts
        if _vmem_bytes(bt, G, Lin, Lg, n_shifts, mm_bytes) > budget:
            continue
        best = bt
    return best


# ---------------------------------------------------------------------------
# Kernel.
# ---------------------------------------------------------------------------
def _residual_units_kernel(x_ref, mask_ref, w1_ref, b1_ref, a1_ref, w2_ref,
                           b2_ref, s1_ref, s2_ref, out_ref, *, Bt, G, shifts):
    rows = Bt * G
    mm_dtype = w1_ref.dtype

    x = x_ref[...].reshape(rows, x_ref.shape[-1])       # f32, lane-dense rows

    def banded_lhs(v):
        """Concat the row-group shifted copies of v on the contraction axis.

        pltpu.roll runs on the XLU (free slot here); rows that wrapped across
        the image top/bottom or a batch boundary are zeroed by the host-built
        mask, reproducing the conv's H zero padding without a padded scratch.
        """
        pieces = []
        for si, s in enumerate(shifts):
            if s == 0:
                pieces.append(v)
            else:
                rolled = pltpu.roll(v, shift=(-s) % rows, axis=0)
                pieces.append(rolled * mask_ref[si])    # (rows,1) mask broadcast
        lhs = pieces[0] if len(pieces) == 1 else jnp.concatenate(pieces, axis=-1)
        return lhs.astype(mm_dtype)                     # bf16 MXU operands

    # conv (Cin -> Cg): one stacked banded matmul, f32 accumulation.
    y = jnp.dot(banded_lhs(x), w1_ref[...], preferred_element_type=jnp.float32)
    y = y + b1_ref[...]
    # PReLU with per-channel slope (tiled across (R, W) on the lane axis), f32.
    mid = jnp.where(y >= 0.0, y, y * a1_ref[...])

    # conv1 (Cg -> Cin): `mid` never round-trips through a VMEM scratch.
    x1 = jnp.dot(banded_lhs(mid), w2_ref[...], preferred_element_type=jnp.float32)
    x1 = x1 + b2_ref[...]

    # weight1 * x + weight2 * x1 in f32; residual read from the resident x.
    out = s1_ref[0, 0] * x + s2_ref[0, 0] * x1
    out_ref[...] = out.reshape(out_ref.shape).astype(out_ref.dtype)


# ---------------------------------------------------------------------------
# Wrapper.
# ---------------------------------------------------------------------------
def residual_units(x, params, *, matmul_dtype=jnp.bfloat16, block_b=None):
    """x: (B, H, W, Cin) float32, NHWC.  Returns (B, H, W, Cin) float32."""
    B, H, W, Cin = x.shape
    w1 = params["w1"]                                   # (K, K, Cin, Cg) HWIO
    K, Cg = w1.shape[0], w1.shape[-1]
    pad = K // 2

    # Fold R image rows onto the fused (W, C) lane axis -> lane-dense blocks.
    R = _pick_row_fold(H, W, Cin)
    assert H % R == 0
    G = H // R
    Lin, Lg = R * W * Cin, R * W * Cg

    # Row-group shifts that cover the kh taps for this (K, R).
    shifts = tuple(range(-((pad + R - 1) // R), (R - 1 + pad) // R + 1))
    n = len(shifts)

    single_tc, vmem_phys = _tpu_meta()
    mm_bytes = np.dtype(matmul_dtype).itemsize
    if block_b is None:
        block_b = _pick_block_b(B, G, Lin, Lg, n, mm_bytes,
                                budget=(vmem_phys * 2) // 5,
                                prefer_multi_step=not single_tc)
    assert B % block_b == 0
    est = _vmem_bytes(block_b, G, Lin, Lg, n, mm_bytes)
    vmem_limit = int(min(vmem_phys * 7 // 8, max(32 << 20, 3 * est)))

    rows = block_b * G
    # Validity of each shifted copy per row (handles H padding + batch edges).
    g = np.arange(rows) % G
    shift_mask = jnp.asarray(
        np.stack([((g + s >= 0) & (g + s < G)).astype(np.float32)
                  for s in shifts])[:, :, None])        # (n, rows, 1)

    # Lane-dense activation layout (pure reshape, no padding pass over HBM).
    x_fold = x.reshape(B, G, Lin)

    w1b = _stacked_banded_weight(w1, W, R, shifts, matmul_dtype)            # (n*Lin, Lg)
    w2b = _stacked_banded_weight(params["w2"], W, R, shifts, matmul_dtype)  # (n*Lg, Lin)
    b1t = jnp.tile(params["b1"].reshape(1, Cg).astype(jnp.float32), (1, R * W))
    a1t = jnp.tile(params["alpha"].reshape(1, Cg).astype(jnp.float32), (1, R * W))
    b2t = jnp.tile(params["b2"].reshape(1, Cin).astype(jnp.float32), (1, R * W))

    kernel = functools.partial(_residual_units_kernel,
                               Bt=block_b, G=G, shifts=shifts)

    grid_spec = pltpu.PrefetchScalarGridSpec(
        num_scalar_prefetch=0,
        grid=(B // block_b,),
        in_specs=[
            pl.BlockSpec((block_b, G, Lin), lambda b: (b, 0, 0)),   # x (lane-dense)
            pl.BlockSpec((n, rows, 1), lambda b: (0, 0, 0)),        # shift masks
            pl.BlockSpec((n * Lin, Lg), lambda b: (0, 0)),          # conv stacked weight
            pl.BlockSpec((1, Lg), lambda b: (0, 0)),                # conv bias
            pl.BlockSpec((1, Lg), lambda b: (0, 0)),                # PReLU alpha
            pl.BlockSpec((n * Lg, Lin), lambda b: (0, 0)),          # conv1 stacked weight
            pl.BlockSpec((1, Lin), lambda b: (0, 0)),               # conv1 bias
            pl.BlockSpec(memory_space=pltpu.MemorySpace.SMEM),      # weight1 scalar
            pl.BlockSpec(memory_space=pltpu.MemorySpace.SMEM),      # weight2 scalar
        ],
        out_specs=pl.BlockSpec((block_b, G, Lin), lambda b: (b, 0, 0)),
    )

    out = pl.pallas_call(
        kernel,
        out_shape=jax.ShapeDtypeStruct((B, G, Lin), x.dtype),
        grid_spec=grid_spec,
        compiler_params=pltpu.CompilerParams(
            dimension_semantics=("parallel",),
            vmem_limit_bytes=vmem_limit),
    )(x_fold, shift_mask, w1b, b1t, a1t, w2b, b2t, params["s1"], params["s2"])

    # TODO(synk): for large H*W add an H-tile grid axis (halo rows via manual DMA)
    # so the activation block and live accumulators stop scaling with H*W, plus a
    # W-tile axis (Wt*Cin ~= 256) to bound the stacked banded weights' O(W^2)
    # footprint and their K/W zero-fill on the MXU.
    return out.reshape(B, H, W, Cin)


# ---------------------------------------------------------------------------
# Pure-JAX reference (f32) and synthetic parameters.
# ---------------------------------------------------------------------------
def _reference(x, params):
    dn = ("NHWC", "HWIO", "NHWC")
    y = lax.conv_general_dilated(x, params["w1"], (1, 1), "SAME",
                                 dimension_numbers=dn)
    y = y + params["b1"].reshape(1, 1, 1, -1)
    alpha = params["alpha"].reshape(1, 1, 1, -1)
    y = jnp.where(y >= 0, y, y * alpha)                  # PReLU
    x1 = lax.conv_general_dilated(y, params["w2"], (1, 1), "SAME",
                                  dimension_numbers=dn)
    x1 = x1 + params["b2"].reshape(1, 1, 1, -1)
    return params["s1"][0, 0] * x + params["s2"][0, 0] * x1


def _init_params(key, in_channels, growth_rate, kernel_size=3):
    k = jax.random.split(key, 6)
    return {
        # HWIO weights (PyTorch OIHW transposed); deterministic synthetic init.
        "w1": 0.1 * jax.random.normal(
            k[0], (kernel_size, kernel_size, in_channels, growth_rate), jnp.float32),
        "b1": 0.1 * jax.random.normal(k[1], (1, growth_rate), jnp.float32),
        "alpha": jnp.full((1, growth_rate), 0.25, jnp.float32),   # PReLU default
        "w2": 0.1 * jax.random.normal(
            k[2], (kernel_size, kernel_size, growth_rate, in_channels), jnp.float32),
        "b2": 0.1 * jax.random.normal(k[3], (1, in_channels), jnp.float32),
        "s1": jnp.ones((1, 1), jnp.float32) + 0.1 * jax.random.normal(k[4], (1, 1)),
        "s2": jnp.ones((1, 1), jnp.float32) + 0.1 * jax.random.normal(k[5], (1, 1)),
    }


if __name__ == "__main__":
    B, Cin, H, W = 2, 4, 16, 16
    growth_rate = 8

    key = jax.random.PRNGKey(0)
    kx, kp = jax.random.split(key)
    # NCHW (PyTorch convention) -> NHWC for the kernel.
    x_nchw = jax.random.normal(kx, (B, Cin, H, W), jnp.float32)
    x = jnp.transpose(x_nchw, (0, 2, 3, 1))

    params = _init_params(kp, Cin, growth_rate, kernel_size=3)
    ref = jax.block_until_ready(_reference(x, params))

    # Structural check: f32-matmul path must match the f32 reference tightly.
    out_f32 = jax.block_until_ready(
        residual_units(x, params, matmul_dtype=jnp.float32))
    if not jnp.allclose(out_f32, ref, atol=1e-4, rtol=1e-4):
        raise AssertionError("Pallas kernel (f32 matmul) mismatch vs reference")

    # Default path: bf16 MXU operands, f32 accumulation / elementwise
    # (tolerance widened only for bf16 operand rounding).
    out = jax.block_until_ready(residual_units(x, params))
    if not jnp.allclose(out, ref, atol=5e-2, rtol=5e-2):
        raise AssertionError("Pallas kernel (bf16 matmul) mismatch vs reference")

    print("KERNEL_OK")
</pallas_src>

<mosaic_0001>
module attributes {stable_mosaic.version = 11 : i64} {
  func.func @_residual_units_kernel(%arg0: i32, %arg1: memref<1x8x128xf32, #tpu.memory_space<vmem>>, %arg2: memref<3x8x1xf32, #tpu.memory_space<vmem>>, %arg3: memref<384x256xf32, #tpu.memory_space<vmem>>, %arg4: memref<1x256xf32, #tpu.memory_space<vmem>>, %arg5: memref<1x256xf32, #tpu.memory_space<vmem>>, %arg6: memref<768x128xf32, #tpu.memory_space<vmem>>, %arg7: memref<1x128xf32, #tpu.memory_space<vmem>>, %arg8: memref<1x1xf32, #tpu.memory_space<smem>>, %arg9: memref<1x1xf32, #tpu.memory_space<smem>>, %arg10: memref<1x8x128xf32, #tpu.memory_space<vmem>>) attributes {dimension_semantics = [#tpu.dimension_semantics<parallel>], iteration_bounds = array<i64: 2>, scalar_prefetch = 0 : i64, scratch_operands = 0 : i64, tpu.core_type = #tpu.core_type<tc>, window_params = [{transform_indices = @transform_0, window_bounds = array<i64: 1, 8, 128>}, {pipeline_mode = #tpu.pipeline_mode<synchronous>, transform_indices = @transform_1, window_bounds = array<i64: 3, 8, 1>}, {pipeline_mode = #tpu.pipeline_mode<synchronous>, transform_indices = @transform_2, window_bounds = array<i64: 384, 256>}, {pipeline_mode = #tpu.pipeline_mode<synchronous>, transform_indices = @transform_3, window_bounds = array<i64: 1, 256>}, {pipeline_mode = #tpu.pipeline_mode<synchronous>, transform_indices = @transform_4, window_bounds = array<i64: 1, 256>}, {pipeline_mode = #tpu.pipeline_mode<synchronous>, transform_indices = @transform_5, window_bounds = array<i64: 768, 128>}, {pipeline_mode = #tpu.pipeline_mode<synchronous>, transform_indices = @transform_6, window_bounds = array<i64: 1, 128>}, {transform_indices = @transform_7, window_bounds = array<i64: 1, 1>}, {transform_indices = @transform_8, window_bounds = array<i64: 1, 1>}, {transform_indices = @transform_9, window_bounds = array<i64: 1, 8, 128>}]} {
    %c0 = arith.constant 0 : index
    %c0_0 = arith.constant 0 : index
    %c0_1 = arith.constant 0 : index
    %0 = vector.load %arg1[%c0, %c0_0, %c0_1] : memref<1x8x128xf32, #tpu.memory_space<vmem>>, vector<1x8x128xf32>
    %1 = vector.shape_cast %0 : vector<1x8x128xf32> to vector<8x128xf32>
    %c1_i32 = arith.constant 1 : i32
    %2 = tpu.dynamic_rotate %1 by %c1_i32 dim 0 : vector<8x128xf32>, i32 -> vector<8x128xf32>
    %c0_2 = arith.constant 0 : index
    %c0_3 = arith.constant 0 : index
    %c0_4 = arith.constant 0 : index
    %3 = vector.load %arg2[%c0_2, %c0_3, %c0_4] : memref<3x8x1xf32, #tpu.memory_space<vmem>>, vector<1x8x1xf32>
    %4 = vector.shape_cast %3 : vector<1x8x1xf32> to vector<8x1xf32>
    %5 = vector.broadcast %4 : vector<8x1xf32> to vector<8x128xf32>
    %6 = arith.mulf %2, %5 : vector<8x128xf32>
    %c7_i32 = arith.constant 7 : i32
    %7 = tpu.dynamic_rotate %1 by %c7_i32 dim 0 : vector<8x128xf32>, i32 -> vector<8x128xf32>
    %c2 = arith.constant 2 : index
    %c0_5 = arith.constant 0 : index
    %c0_6 = arith.constant 0 : index
    %8 = vector.load %arg2[%c2, %c0_5, %c0_6] : memref<3x8x1xf32, #tpu.memory_space<vmem>>, vector<1x8x1xf32>
    %9 = vector.shape_cast %8 : vector<1x8x1xf32> to vector<8x1xf32>
    %10 = vector.broadcast %9 : vector<8x1xf32> to vector<8x128xf32>
    %11 = arith.mulf %7, %10 : vector<8x128xf32>
    %12 = tpu.concatenate %6, %1, %11 in 1 : vector<8x128xf32>, vector<8x128xf32>, vector<8x128xf32> -> vector<8x384xf32>
    %c0_7 = arith.constant 0 : index
    %c0_8 = arith.constant 0 : index
    %13 = vector.load %arg3[%c0_7, %c0_8] : memref<384x256xf32, #tpu.memory_space<vmem>>, vector<384x256xf32>
    %cst = arith.constant dense<0.000000e+00> : vector<8x256xf32>
    %14 = tpu.matmul %12, %13, %cst {dimension_numbers = #tpu.dot_dimension_numbers<[1], [0], [0], [1], [0, 0, 1, 1], [], []>} : vector<8x384xf32>, vector<384x256xf32>, vector<8x256xf32> -> vector<8x256xf32>
    %c0_9 = arith.constant 0 : index
    %c0_10 = arith.constant 0 : index
    %15 = vector.load %arg4[%c0_9, %c0_10] : memref<1x256xf32, #tpu.memory_space<vmem>>, vector<1x256xf32>
    %16 = vector.broadcast %15 : vector<1x256xf32> to vector<8x256xf32>
    %17 = arith.addf %14, %16 : vector<8x256xf32>
    %cst_11 = arith.constant 0.000000e+00 : f32
    %18 = vector.broadcast %cst_11 : f32 to vector<8x256xf32>
    %19 = arith.cmpf oge, %17, %18 : vector<8x256xf32>
    %c0_12 = arith.constant 0 : index
    %c0_13 = arith.constant 0 : index
    %20 = vector.load %arg5[%c0_12, %c0_13] : memref<1x256xf32, #tpu.memory_space<vmem>>, vector<1x256xf32>
    %21 = vector.broadcast %20 : vector<1x256xf32> to vector<8x256xf32>
    %22 = arith.mulf %17, %21 : vector<8x256xf32>
    %23 = arith.select %19, %17, %22 : vector<8x256xi1>, vector<8x256xf32>
    %c1_i32_14 = arith.constant 1 : i32
    %24 = tpu.dynamic_rotate %23 by %c1_i32_14 dim 0 : vector<8x256xf32>, i32 -> vector<8x256xf32>
    %c0_15 = arith.constant 0 : index
    %c0_16 = arith.constant 0 : index
    %c0_17 = arith.constant 0 : index
    %25 = vector.load %arg2[%c0_15, %c0_16, %c0_17] : memref<3x8x1xf32, #tpu.memory_space<vmem>>, vector<1x8x1xf32>
    %26 = vector.shape_cast %25 : vector<1x8x1xf32> to vector<8x1xf32>
    %27 = vector.broadcast %26 : vector<8x1xf32> to vector<8x256xf32>
    %28 = arith.mulf %24, %27 : vector<8x256xf32>
    %c7_i32_18 = arith.constant 7 : i32
    %29 = tpu.dynamic_rotate %23 by %c7_i32_18 dim 0 : vector<8x256xf32>, i32 -> vector<8x256xf32>
    %c2_19 = arith.constant 2 : index
    %c0_20 = arith.constant 0 : index
    %c0_21 = arith.constant 0 : index
    %30 = vector.load %arg2[%c2_19, %c0_20, %c0_21] : memref<3x8x1xf32, #tpu.memory_space<vmem>>, vector<1x8x1xf32>
    %31 = vector.shape_cast %30 : vector<1x8x1xf32> to vector<8x1xf32>
    %32 = vector.broadcast %31 : vector<8x1xf32> to vector<8x256xf32>
    %33 = arith.mulf %29, %32 : vector<8x256xf32>
    %34 = tpu.concatenate %28, %23, %33 in 1 : vector<8x256xf32>, vector<8x256xf32>, vector<8x256xf32> -> vector<8x768xf32>
    %c0_22 = arith.constant 0 : index
    %c0_23 = arith.constant 0 : index
    %35 = vector.load %arg6[%c0_22, %c0_23] : memref<768x128xf32, #tpu.memory_space<vmem>>, vector<768x128xf32>
    %cst_24 = arith.constant dense<0.000000e+00> : vector<8x128xf32>
    %36 = tpu.matmul %34, %35, %cst_24 {dimension_numbers = #tpu.dot_dimension_numbers<[1], [0], [0], [1], [0, 0, 1, 1], [], []>} : vector<8x768xf32>, vector<768x128xf32>, vector<8x128xf32> -> vector<8x128xf32>
    %c0_25 = arith.constant 0 : index
    %c0_26 = arith.constant 0 : index
    %37 = vector.load %arg7[%c0_25, %c0_26] : memref<1x128xf32, #tpu.memory_space<vmem>>, vector<1x128xf32>
    %38 = vector.broadcast %37 : vector<1x128xf32> to vector<8x128xf32>
    %39 = arith.addf %36, %38 : vector<8x128xf32>
    %c0_27 = arith.constant 0 : index
    %c0_28 = arith.constant 0 : index
    %40 = memref.load %arg8[%c0_27, %c0_28] : memref<1x1xf32, #tpu.memory_space<smem>>
    %41 = vector.broadcast %40 : f32 to vector<8x128xf32>
    %42 = arith.mulf %41, %1 : vector<8x128xf32>
    %c0_29 = arith.constant 0 : index
    %c0_30 = arith.constant 0 : index
    %43 = memref.load %arg9[%c0_29, %c0_30] : memref<1x1xf32, #tpu.memory_space<smem>>
    %44 = vector.broadcast %43 : f32 to vector<8x128xf32>
    %45 = arith.mulf %44, %39 : vector<8x128xf32>
    %46 = arith.addf %42, %45 : vector<8x128xf32>
    %47 = vector.shape_cast %46 : vector<8x128xf32> to vector<1x8x128xf32>
    %c0_31 = arith.constant 0 : index
    %c0_32 = arith.constant 0 : index
    %c0_33 = arith.constant 0 : index
    %48 = vector.load %arg10[%c0_31, %c0_32, %c0_33] : memref<1x8x128xf32, #tpu.memory_space<vmem>>, vector<1x8x128xf32>
    tpu.vector_store %arg10[%c0_31, %c0_32, %c0_33], %47 {strides = array<i32>} : memref<1x8x128xf32, #tpu.memory_space<vmem>>, vector<1x8x128xf32>,
    return
  }
  func.func @transform_0(%arg0: i32) -> (i32, i32, i32) {
    %c0_i32 = arith.constant 0 : i32
    %c0_i32_0 = arith.constant 0 : i32
    %c0_i32_1 = arith.constant 0 : i32
    return %arg0, %c0_i32, %c0_i32_0 : i32, i32, i32
  }
  func.func @transform_1(%arg0: i32) -> (i32, i32, i32) {
    %c0_i32 = arith.constant 0 : i32
    %c0_i32_0 = arith.constant 0 : i32
    %c0_i32_1 = arith.constant 0 : i32
    %c0_i32_2 = arith.constant 0 : i32
    return %c0_i32, %c0_i32_0, %c0_i32_1 : i32, i32, i32
  }
  func.func @transform_2(%arg0: i32) -> (i32, i32) {
    %c0_i32 = arith.constant 0 : i32
    %c0_i32_0 = arith.constant 0 : i32
    %c0_i32_1 = arith.constant 0 : i32
    return %c0_i32, %c0_i32_0 : i32, i32
  }
  func.func @transform_3(%arg0: i32) -> (i32, i32) {
    %c0_i32 = arith.constant 0 : i32
    %c0_i32_0 = arith.constant 0 : i32
    %c0_i32_1 = arith.constant 0 : i32
    return %c0_i32, %c0_i32_0 : i32, i32
  }
  func.func @transform_4(%arg0: i32) -> (i32, i32) {
    %c0_i32 = arith.constant 0 : i32
    %c0_i32_0 = arith.constant 0 : i32
    %c0_i32_1 = arith.constant 0 : i32
    return %c0_i32, %c0_i32_0 : i32, i32
  }
  func.func @transform_5(%arg0: i32) -> (i32, i32) {
    %c0_i32 = arith.constant 0 : i32
    %c0_i32_0 = arith.constant 0 : i32
    %c0_i32_1 = arith.constant 0 : i32
    return %c0_i32, %c0_i32_0 : i32, i32
  }
  func.func @transform_6(%arg0: i32) -> (i32, i32) {
    %c0_i32 = arith.constant 0 : i32
    %c0_i32_0 = arith.constant 0 : i32
    %c0_i32_1 = arith.constant 0 : i32
    return %c0_i32, %c0_i32_0 : i32, i32
  }
  func.func @transform_7(%arg0: i32) -> (i32, i32) {
    %c0_i32 = arith.constant 0 : i32
    %c0_i32_0 = arith.constant 0 : i32
    %c0_i32_1 = arith.constant 0 : i32
    return %c0_i32, %c0_i32_0 : i32, i32
  }
  func.func @transform_8(%arg0: i32) -> (i32, i32) {
    %c0_i32 = arith.constant 0 : i32
    %c0_i32_0 = arith.constant 0 : i32
    %c0_i32_1 = arith.constant 0 : i32
    return %c0_i32, %c0_i32_0 : i32, i32
  }
  func.func @transform_9(%arg0: i32) -> (i32, i32, i32) {
    %c0_i32 = arith.constant 0 : i32
    %c0_i32_0 = arith.constant 0 : i32
    %c0_i32_1 = arith.constant 0 : i32
    return %arg0, %c0_i32, %c0_i32_0 : i32, i32, i32
  }
}

</mosaic_0001>

<llo_original>
// kernel: tpu_custom_call.1
$region0: #{tpu_custom_call.1}
  #allocation0 [shape = 'u32[]', space=smem, size = 0x4, offset = 0x4, fixed_abs, tag = 'smem constant byte address 0x4 - core index']
  #allocation1 [shape = 'u32[144,128]{1,0:T(1,128)}', space=vmem, size = 0x12000, scoped, tag = 'internal scratch']
  #allocation2 [shape = 'f32[1,1]{1,0:T(1,128)S(6)}', space=smem, size = 0x200, scoped, tag = 'scoped memory for tpu_custom_call.1']
  #allocation3 [shape = 'f32[1,1]{1,0:T(1,128)S(6)}', space=smem, size = 0x200, scoped, tag = 'scoped memory for tpu_custom_call.1']
  %s0 = inlined_call_operand.vmem [shape: f32[2,8,128], index: 0, kind: input, shape index: {}]
  %s1 = inlined_call_operand.vmem [shape: f32[3,8,1], index: 1, kind: input, shape index: {}]
  %s2 = inlined_call_operand.hbm [shape: f32[384,256], index: 2, kind: input, shape index: {}]
  %s3 = inlined_call_operand.vmem [shape: f32[1,256], index: 3, kind: input, shape index: {}]
  %s4 = inlined_call_operand.vmem [shape: f32[1,256], index: 4, kind: input, shape index: {}]
  %s5 = inlined_call_operand.hbm [shape: f32[768,128], index: 5, kind: input, shape index: {}]
  %s6 = inlined_call_operand.vmem [shape: f32[1,128], index: 6, kind: input, shape index: {}]
  %s7 = inlined_call_operand.<no memory space> [shape: f32[1,1], index: 7, kind: input, shape index: {}]
  %s8 = inlined_call_operand.<no memory space> [shape: f32[1,1], index: 8, kind: input, shape index: {}]
  %s9 = inlined_call_operand.hbm [shape: f32[2,8,128], index: 9, kind: output, shape index: {}]
  %s10 = sld [smem:[#allocation0]]
  $region77: #{tpu_custom_call.1} parent=0
    _
  %s12 = ssub.s32 1, %s10
  %s13 = scalar_select 0, %s12, %s10
  %14 = sst [smem:[#allocation2]] %s7
  %15 = sst [smem:[#allocation3]] %s8
  $region1: #{tpu_custom_call.1} parent=0
    #allocation4 [shape = 'u8[393216]{0}', space=vmem, size = 0x60000, scoped, tag = 'input window, operand 2, single buffered']
    #allocation5 [shape = 's32[2]{0}', space=sflag, size = 0x8, scoped, tag = 'scoped memory for tpu_custom_call.1']
    #allocation6 [shape = 's32[2]{0}', space=sflag, size = 0x8, scoped, tag = 'scoped memory for tpu_custom_call.1']
    #allocation7 [shape = 'u8[393216]{0}', space=vmem, size = 0x60000, scoped, tag = 'input window, operand 5, single buffered']
    #allocation8 [shape = 's32[1]{0}', space=sflag, size = 0x4, scoped, tag = 'scoped memory for tpu_custom_call.1']
    #allocation9 [shape = 'u8[8192]{0}', space=vmem, size = 0x2000, scoped, tag = 'output window, operand 0']
    %16 = vsyncpa [#allocation5], 0
    %17 = vsyncpa [#allocation8], 0
    %18 = vsyncpa [#allocation6], 0
    %s19 = scalar_lea.sflag [#allocation6], 1
    %20 = vsyncpa %s19, 0
    loop: start=0, step=1, limit=4
    $region2: #{tpu_custom_call.1} parent=1 // loop_pre_header
      _
    $region3: #{tpu_custom_call.1} parent=1 // loop_header
      %s22 = sphi 0, %s26
      %p23 = scmp.ge.s32.totalorder %s22, 4
      %s32 = sphi 0, %s34
      %s35 = sphi 0, %s32
      %s36 = sphi 0, %s35
      %s52 = sphi 0, %s36
      %s56 = sphi 0, %s56
      %s58 = sphi 0, %s56
      %s59 = sphi 0, %s58
      %s73 = sphi 0, %s59
      %s77 = sphi 0, %s77
      %s79 = sphi 0, %s77
      %s80 = sphi 0, %s79
      %s94 = sphi 0, %s80
      %s98 = sphi 0, %s98
      %s100 = sphi 0, %s98
      %s101 = sphi 0, %s100
      %s115 = sphi 0, %s101
      %s119 = sphi 0, %s119
      %s121 = sphi 0, %s119
      %s122 = sphi 0, %s121
      %s136 = sphi 0, %s122
      %s140 = sphi 0, %s140
      %s142 = sphi 0, %s140
      %s143 = sphi 0, %s142
      %s157 = sphi 0, %s143
      %s161 = sphi 0, %s161
      %s163 = sphi 0, %s161
      %s164 = sphi 0, %s163
      %s178 = sphi 0, %s164
      %s182 = sphi 0, %s182
      %s184 = sphi 0, %s182
      %s185 = sphi 0, %s184
      %s199 = sphi 0, %s185
      %s203 = sphi 0, %s203
      %s205 = sphi 0, %s203
      %s206 = sphi 0, %s205
      %s220 = sphi 0, %s206
      %s226 = sphi 0, %s228
      %s229 = sphi 0, %s226
      %s230 = sphi 0, %s229
      %s246 = sphi 0, %s230
    $region4: #{tpu_custom_call.1} parent=1 // loop_header_branch
      %25 = sbr.rel (%p23) target = $region8
    $region5: #{tpu_custom_call.1} parent=1 // loop_body
      %s27 = ssub.s32 %s22, 1
      %s28 = ssub.s32 %s22, 2
      %s29 = sadd.s32 %s22, 1
      %s30 = ssub.s32 %s22, %s29
      %p31 = scmp.eq.s32.totalorder %s30, 0
      %s33 = sadd.s32 %s32, 1
      %s34 = scalar_select %p31, %s32, %s33
      %p37 = pneg %p31
      %p38 = scmp.eq.s32.totalorder %s22, 1
      %p39 = por %p37, %p38
      %p40 = scmp.ne.s32.totalorder %s32, %s35
      %p41 = scmp.eq.s32.totalorder %s22, 0
      %p42 = por %p40, %p41
      %p43 = scmp.ne.s32.totalorder %s32, %s35
      %p44 = scmp.eq.s32.totalorder %s27, 1
      %p45 = por %p43, %p44
      %p46 = scmp.ne.s32.totalorder %s35, %s36
      %p47 = scmp.eq.s32.totalorder %s27, 0
      %p48 = por %p46, %p47
      %p49 = scmp.ne.s32.totalorder %s35, %s36
      %p50 = scmp.eq.s32.totalorder %s28, 1
      %p51 = por %p49, %p50
      %p53 = scmp.ne.s32.totalorder %s36, %s52
      %p54 = scmp.eq.s32.totalorder %s28, 0
      %p55 = por %p53, %p54
      %s57 = sadd.s32 %s56, 1
      %p60 = scmp.eq.s32.totalorder %s22, 1
      %p61 = scmp.ne.s32.totalorder %s56, %s58
      %p62 = scmp.eq.s32.totalorder %s22, 0
      %p63 = por %p61, %p62
      %p64 = scmp.ne.s32.totalorder %s56, %s58
      %p65 = scmp.eq.s32.totalorder %s27, 1
      %p66 = por %p64, %p65
      %p67 = scmp.ne.s32.totalorder %s58, %s59
      %p68 = scmp.eq.s32.totalorder %s27, 0
      %p69 = por %p67, %p68
      %p70 = scmp.ne.s32.totalorder %s58, %s59
      %p71 = scmp.eq.s32.totalorder %s28, 1
      %p72 = por %p70, %p71
      %p74 = scmp.ne.s32.totalorder %s59, %s73
      %p75 = scmp.eq.s32.totalorder %s28, 0
      %p76 = por %p74, %p75
      %s78 = sadd.s32 %s77, 1
      %p81 = scmp.eq.s32.totalorder %s22, 1
      %p82 = scmp.ne.s32.totalorder %s77, %s79
      %p83 = scmp.eq.s32.totalorder %s22, 0
      %p84 = por %p82, %p83
      %p85 = scmp.ne.s32.totalorder %s77, %s79
      %p86 = scmp.eq.s32.totalorder %s27, 1
      %p87 = por %p85, %p86
      %p88 = scmp.ne.s32.totalorder %s79, %s80
      %p89 = scmp.eq.s32.totalorder %s27, 0
      %p90 = por %p88, %p89
      %p91 = scmp.ne.s32.totalorder %s79, %s80
      %p92 = scmp.eq.s32.totalorder %s28, 1
      %p93 = por %p91, %p92
      %p95 = scmp.ne.s32.totalorder %s80, %s94
      %p96 = scmp.eq.s32.totalorder %s28, 0
      %p97 = por %p95, %p96
      %s99 = sadd.s32 %s98, 1
      %p102 = scmp.eq.s32.totalorder %s22, 1
      %p103 = scmp.ne.s32.totalorder %s98, %s100
      %p104 = scmp.eq.s32.totalorder %s22, 0
      %p105 = por %p103, %p104
      %p106 = scmp.ne.s32.totalorder %s98, %s100
      %p107 = scmp.eq.s32.totalorder %s27, 1
      %p108 = por %p106, %p107
      %p109 = scmp.ne.s32.totalorder %s100, %s101
      %p110 = scmp.eq.s32.totalorder %s27, 0
      %p111 = por %p109, %p110
      %p112 = scmp.ne.s32.totalorder %s100, %s101
      %p113 = scmp.eq.s32.totalorder %s28, 1
      %p114 = por %p112, %p113
      %p116 = scmp.ne.s32.totalorder %s101, %s115
      %p117 = scmp.eq.s32.totalorder %s28, 0
      %p118 = por %p116, %p117
      %s120 = sadd.s32 %s119, 1
      %p123 = scmp.eq.s32.totalorder %s22, 1
      %p124 = scmp.ne.s32.totalorder %s119, %s121
      %p125 = scmp.eq.s32.totalorder %s22, 0
      %p126 = por %p124, %p125
      %p127 = scmp.ne.s32.totalorder %s119, %s121
      %p128 = scmp.eq.s32.totalorder %s27, 1
      %p129 = por %p127, %p128
      %p130 = scmp.ne.s32.totalorder %s121, %s122
      %p131 = scmp.eq.s32.totalorder %s27, 0
      %p132 = por %p130, %p131
      %p133 = scmp.ne.s32.totalorder %s121, %s122
      %p134 = scmp.eq.s32.totalorder %s28, 1
      %p135 = por %p133, %p134
      %p137 = scmp.ne.s32.totalorder %s122, %s136
      %p138 = scmp.eq.s32.totalorder %s28, 0
      %p139 = por %p137, %p138
      %s141 = sadd.s32 %s140, 1
      %p144 = scmp.eq.s32.totalorder %s22, 1
      %p145 = scmp.ne.s32.totalorder %s140, %s142
      %p146 = scmp.eq.s32.totalorder %s22, 0
      %p147 = por %p145, %p146
      %p148 = scmp.ne.s32.totalorder %s140, %s142
      %p149 = scmp.eq.s32.totalorder %s27, 1
      %p150 = por %p148, %p149
      %p151 = scmp.ne.s32.totalorder %s142, %s143
      %p152 = scmp.eq.s32.totalorder %s27, 0
      %p153 = por %p151, %p152
      %p154 = scmp.ne.s32.totalorder %s142, %s143
      %p155 = scmp.eq.s32.totalorder %s28, 1
      %p156 = por %p154, %p155
      %p158 = scmp.ne.s32.totalorder %s143, %s157
      %p159 = scmp.eq.s32.totalorder %s28, 0
      %p160 = por %p158, %p159
      %s162 = sadd.s32 %s161, 1
      %p165 = scmp.eq.s32.totalorder %s22, 1
      %p166 = scmp.ne.s32.totalorder %s161, %s163
      %p167 = scmp.eq.s32.totalorder %s22, 0
      %p168 = por %p166, %p167
      %p169 = scmp.ne.s32.totalorder %s161, %s163
      %p170 = scmp.eq.s32.totalorder %s27, 1
      %p171 = por %p169, %p170
      %p172 = scmp.ne.s32.totalorder %s163, %s164
      %p173 = scmp.eq.s32.totalorder %s27, 0
      %p174 = por %p172, %p173
      %p175 = scmp.ne.s32.totalorder %s163, %s164
      %p176 = scmp.eq.s32.totalorder %s28, 1
      %p177 = por %p175, %p176
      %p179 = scmp.ne.s32.totalorder %s164, %s178
      %p180 = scmp.eq.s32.totalorder %s28, 0
      %p181 = por %p179, %p180
      %s183 = sadd.s32 %s182, 1
      %p186 = scmp.eq.s32.totalorder %s22, 1
      %p187 = scmp.ne.s32.totalorder %s182, %s184
      %p188 = scmp.eq.s32.totalorder %s22, 0
      %p189 = por %p187, %p188
      %p190 = scmp.ne.s32.totalorder %s182, %s184
      %p191 = scmp.eq.s32.totalorder %s27, 1
      %p192 = por %p190, %p191
      %p193 = scmp.ne.s32.totalorder %s184, %s185
      %p194 = scmp.eq.s32.totalorder %s27, 0
      %p195 = por %p193, %p194
      %p196 = scmp.ne.s32.totalorder %s184, %s185
      %p197 = scmp.eq.s32.totalorder %s28, 1
      %p198 = por %p196, %p197
      %p200 = scmp.ne.s32.totalorder %s185, %s199
      %p201 = scmp.eq.s32.totalorder %s28, 0
      %p202 = por %p200, %p201
      %s204 = sadd.s32 %s203, 1
      %p207 = scmp.eq.s32.totalorder %s22, 1
      %p208 = scmp.ne.s32.totalorder %s203, %s205
      %p209 = scmp.eq.s32.totalorder %s22, 0
      %p210 = por %p208, %p209
      %p211 = scmp.ne.s32.totalorder %s203, %s205
      %p212 = scmp.eq.s32.totalorder %s27, 1
      %p213 = por %p211, %p212
      %p214 = scmp.ne.s32.totalorder %s205, %s206
      %p215 = scmp.eq.s32.totalorder %s27, 0
      %p216 = por %p214, %p215
      %p217 = scmp.ne.s32.totalorder %s205, %s206
      %p218 = scmp.eq.s32.totalorder %s28, 1
      %p219 = por %p217, %p218
      %p221 = scmp.ne.s32.totalorder %s206, %s220
      %p222 = scmp.eq.s32.totalorder %s28, 0
      %p223 = por %p221, %p222
      %s224 = ssub.s32 %s22, %s29
      %p225 = scmp.eq.s32.totalorder %s224, 0
      %s227 = sadd.s32 %s226, 1
      %s228 = scalar_select %p225, %s226, %s227
      %p231 = pneg %p225
      %p232 = scmp.eq.s32.totalorder %s22, 1
      %p233 = por %p231, %p232
      %p234 = scmp.ne.s32.totalorder %s226, %s229
      %p235 = scmp.eq.s32.totalorder %s22, 0
      %p236 = por %p234, %p235
      %p237 = scmp.ne.s32.totalorder %s226, %s229
      %p238 = scmp.eq.s32.totalorder %s27, 1
      %p239 = por %p237, %p238
      %p240 = scmp.ne.s32.totalorder %s229, %s230
      %p241 = scmp.eq.s32.totalorder %s27, 0
      %p242 = por %p240, %p241
      %p243 = scmp.ne.s32.totalorder %s229, %s230
      %p244 = scmp.eq.s32.totalorder %s28, 1
      %p245 = por %p243, %p244
      %p247 = scmp.ne.s32.totalorder %s230, %s246
      %p248 = scmp.eq.s32.totalorder %s28, 0
      %p249 = por %p247, %p248
      %p250 = scmp.le.s32.totalorder 1, %s22
      %p251 = scmp.lt.s32.totalorder %s22, 3
      %p252 = pnand %p250, %p251
      %p253 = pneg %p252
      // Predicated region
      $region9: #{tpu_custom_call.1} parent=5 // pred_check
        _
      $region10: #{tpu_custom_call.1} parent=5 // pred_check_branch
        %255 = sbr.rel (%p252) target = $region12
      $region11: #{tpu_custom_call.1} parent=5 // pred_region
        %s256 = ssub.s32 %s22, 1
        // Predicated region
        $region13: #{tpu_custom_call.1} parent=11 // pred_check
          %p257 = pneg %p69
        $region14: #{tpu_custom_call.1} parent=11 // pred_check_branch
          %259 = sbr.rel (%p257) target = $region16
        $region15: #{tpu_custom_call.1} parent=11 // pred_region
          _
        $region16: #{tpu_custom_call.1} parent=11 // pred_fallthru
          _
        // Predicated region
        $region17: #{tpu_custom_call.1} parent=11 // pred_check
          %p260 = pneg %p90
        $region18: #{tpu_custom_call.1} parent=11 // pred_check_branch
          %262 = sbr.rel (%p260) target = $region20
        $region19: #{tpu_custom_call.1} parent=11 // pred_region
          %s264 = ssub.s32 12288, 12288
          %265 = vsyncadd [#allocation5], %s264
          %s266 = sshll.u32 [#allocation4], 4
          %s267 = int_to_ptr.vmem [resolvable:$true] %s266
          %272 = dma.hbm_to_vmem [thread:$0]  %s2, 12288, %s267, [#allocation5], 256, 256, 16
        $region20: #{tpu_custom_call.1} parent=11 // pred_fallthru
          _
        // Predicated region
        $region21: #{tpu_custom_call.1} parent=11 // pred_check
          %p273 = pneg %p111
        $region22: #{tpu_custom_call.1} parent=11 // pred_check_branch
          %275 = sbr.rel (%p273) target = $region24
        $region23: #{tpu_custom_call.1} parent=11 // pred_region
          _
        $region24: #{tpu_custom_call.1} parent=11 // pred_fallthru
          _
        // Predicated region
        $region25: #{tpu_custom_call.1} parent=11 // pred_check
          %p276 = pneg %p132
        $region26: #{tpu_custom_call.1} parent=11 // pred_check_branch
          %278 = sbr.rel (%p276) target = $region28
        $region27: #{tpu_custom_call.1} parent=11 // pred_region
          _
        $region28: #{tpu_custom_call.1} parent=11 // pred_fallthru
          _
        // Predicated region
        $region29: #{tpu_custom_call.1} parent=11 // pred_check
          %p279 = pneg %p153
        $region30: #{tpu_custom_call.1} parent=11 // pred_check_branch
          %281 = sbr.rel (%p279) target = $region32
        $region31: #{tpu_custom_call.1} parent=11 // pred_region
          %s283 = ssub.s32 12288, 12288
          %284 = vsyncadd [#allocation8], %s283
          %s285 = sshll.u32 [#allocation7], 4
          %s286 = int_to_ptr.vmem [resolvable:$true] %s285
          %291 = dma.hbm_to_vmem [thread:$0]  %s5, 12288, %s286, [#allocation8], 128, 128, 8
        $region32: #{tpu_custom_call.1} parent=11 // pred_fallthru
          _
        // Predicated region
        $region33: #{tpu_custom_call.1} parent=11 // pred_check
          %p292 = pneg %p174
        $region34: #{tpu_custom_call.1} parent=11 // pred_check_branch
          %294 = sbr.rel (%p292) target = $region36
        $region35: #{tpu_custom_call.1} parent=11 // pred_region
          _
        $region36: #{tpu_custom_call.1} parent=11 // pred_fallthru
          _
        // Predicated region
        $region37: #{tpu_custom_call.1} parent=11 // pred_check
          %p295 = pneg %p195
        $region38: #{tpu_custom_call.1} parent=11 // pred_check_branch
          %297 = sbr.rel (%p295) target = $region40
        $region39: #{tpu_custom_call.1} parent=11 // pred_region
          _
        $region40: #{tpu_custom_call.1} parent=11 // pred_fallthru
          _
        // Predicated region
        $region41: #{tpu_custom_call.1} parent=11 // pred_check
          %p298 = pneg %p216
        $region42: #{tpu_custom_call.1} parent=11 // pred_check_branch
          %300 = sbr.rel (%p298) target = $region44
        $region43: #{tpu_custom_call.1} parent=11 // pred_region
          _
        $region44: #{tpu_custom_call.1} parent=11 // pred_fallthru
          _
      $region12: #{tpu_custom_call.1} parent=5 // pred_fallthru
        _
      %p301 = scmp.lt.s32.totalorder %s22, 2
      // Predicated region
      $region45: #{tpu_custom_call.1} parent=5 // pred_check
        %p302 = pneg %p301
      $region46: #{tpu_custom_call.1} parent=5 // pred_check_branch
        %304 = sbr.rel (%p302) target = $region48
      $region47: #{tpu_custom_call.1} parent=5 // pred_region
        // Predicated region
        $region49: #{tpu_custom_call.1} parent=47 // pred_check
          %p305 = pneg %p42
        $region50: #{tpu_custom_call.1} parent=47 // pred_check_branch
          %307 = sbr.rel (%p305) target = $region52
        $region51: #{tpu_custom_call.1} parent=47 // pred_region
          %p308 = scmp.lt.s32.totalorder %s22, 1
          %s309 = scalar_select %p308, %s22, 1
          %s310 = smul.addr %s309, 8
          %s311 = scalar_lea.vmem %s0, %s310
        $region52: #{tpu_custom_call.1} parent=47 // pred_fallthru
          _
      $region48: #{tpu_custom_call.1} parent=5 // pred_fallthru
        _
      %p312 = scmp.le.s32.totalorder 1, %s22
      %p313 = scmp.lt.s32.totalorder %s22, 3
      %p314 = pnand %p312, %p313
      %p315 = pneg %p314
      // Predicated region
      $region53: #{tpu_custom_call.1} parent=5 // pred_check
        _
      $region54: #{tpu_custom_call.1} parent=5 // pred_check_branch
        %317 = sbr.rel (%p314) target = $region56
      $region55: #{tpu_custom_call.1} parent=5 // pred_region
        %s318 = ssub.s32 %s22, 1
        // Predicated region
        $region57: #{tpu_custom_call.1} parent=55 // pred_check
          %p319 = pneg %p90
        $region58: #{tpu_custom_call.1} parent=55 // pred_check_branch
          %321 = sbr.rel (%p319) target = $region60
        $region59: #{tpu_custom_call.1} parent=55 // pred_region
          %322 = dma.done [#allocation5], 12288
        $region60: #{tpu_custom_call.1} parent=55 // pred_fallthru
          _
        // Predicated region
        $region61: #{tpu_custom_call.1} parent=55 // pred_check
          %p323 = pneg %p153
        $region62: #{tpu_custom_call.1} parent=55 // pred_check_branch
          %325 = sbr.rel (%p323) target = $region64
        $region63: #{tpu_custom_call.1} parent=55 // pred_region
          %326 = dma.done [#allocation8], 12288
        $region64: #{tpu_custom_call.1} parent=55 // pred_fallthru
          _
        %p327 = scmp.lt.s32.totalorder %s27, 1
        %s328 = scalar_select %p327, %s27, 1
        %s329 = smul.addr %s328, 8
        %s330 = scalar_lea.vmem %s0, %s329
        %p331 = pneg %p48
        %p332 = pneg %p45
        %p333 = pneg %p69
        %p334 = pneg %p66
        %p335 = pneg %p90
        %p336 = pneg %p87
        %p337 = pneg %p111
        %p338 = pneg %p108
        %p339 = pneg %p132
        %p340 = pneg %p129
        %p341 = pneg %p153
        %p342 = pneg %p150
        %p343 = pneg %p174
        %p344 = pneg %p171
        %p345 = pneg %p195
        %p346 = pneg %p192
        %p347 = pneg %p216
        %p348 = pneg %p213
        %p349 = pneg %p242
        %p350 = pneg %p239
        %s351 = sand.u32 %s229, 1
        %s352 = scalar_lea.sflag [#allocation6], %s351
        %s353 = sand.u32 %s229, 1
        %s354 = smul.addr %s353, 8
        %s355 = scalar_lea.vmem [#allocation9], %s354
        %p356 = scmp.lt.s32.totalorder %s27, 1
        %s357 = scalar_select %p356, %s27, 1
        %s358 = smul.addr %s357, 8
        %s359 = scalar_lea.vmem %s0, %s358
        %v360 = vld [vmem:[%s359] sm:$0xff]
        %v361 = vrot.slane %v360, 7
        %v362 = vld [vmem:[%s1] sm:$0xff]
        %364 = vset.pattern.permute.xlu0 0
        %365 = vperm.xlu0 %364, %v362
        %v366 = vpop.permute.xlu0 %365
        %v368 = vmul.f32 %v361, %v366
        %v369 = vrot.slane %v360, 1
        %s370 = scalar_lea.vmem %s1, 16
        %v371 = vld [vmem:[%s370] sm:$0xff]
        %373 = vset.pattern.permute.xlu0 0
        %374 = vperm.xlu0 %373, %v371
        %v375 = vpop.permute.xlu0 %374
        %v377 = vmul.f32 %v369, %v375
        %v378 = vld [vmem:[#allocation4] sm:$0xff]
        %v379 = vld [vmem:[#allocation4 + $0x8] sm:$0xff]
        %v380 = vld [vmem:[#allocation4 + $0x10] sm:$0xff]
        %v381 = vld [vmem:[#allocation4 + $0x18] sm:$0xff]
        %v382 = vld [vmem:[#allocation4 + $0x20] sm:$0xff]
        %v383 = vld [vmem:[#allocation4 + $0x28] sm:$0xff]
        %v384 = vld [vmem:[#allocation4 + $0x30] sm:$0xff]
        %v385 = vld [vmem:[#allocation4 + $0x38] sm:$0xff]
        %v386 = vld [vmem:[#allocation4 + $0x40] sm:$0xff]
        %v387 = vld [vmem:[#allocation4 + $0x48] sm:$0xff]
        %v388 = vld [vmem:[#allocation4 + $0x50] sm:$0xff]
        %v389 = vld [vmem:[#allocation4 + $0x58] sm:$0xff]
        %v390 = vld [vmem:[#allocation4 + $0x60] sm:$0xff]
        %v391 = vld [vmem:[#allocation4 + $0x68] sm:$0xff]
        %v392 = vld [vmem:[#allocation4 + $0x70] sm:$0xff]
        %v393 = vld [vmem:[#allocation4 + $0x78] sm:$0xff]
        %v394 = vld [vmem:[#allocation4 + $0x80] sm:$0xff]
        %v395 = vld [vmem:[#allocation4 + $0x88] sm:$0xff]
        %v396 = vld [vmem:[#allocation4 + $0x90] sm:$0xff]
        %v397 = vld [vmem:[#allocation4 + $0x98] sm:$0xff]
        %v398 = vld [vmem:[#allocation4 + $0xa0] sm:$0xff]
        %v399 = vld [vmem:[#allocation4 + $0xa8] sm:$0xff]
        %v400 = vld [vmem:[#allocation4 + $0xb0] sm:$0xff]
        %v401 = vld [vmem:[#allocation4 + $0xb8] sm:$0xff]
        %v402 = vld [vmem:[#allocation4 + $0xc0] sm:$0xff]
        %v403 = vld [vmem:[#allocation4 + $0xc8] sm:$0xff]
        %v404 = vld [vmem:[#allocation4 + $0xd0] sm:$0xff]
        %v405 = vld [vmem:[#allocation4 + $0xd8] sm:$0xff]
        %v406 = vld [vmem:[#allocation4 + $0xe0] sm:$0xff]
        %v407 = vld [vmem:[#allocation4 + $0xe8] sm:$0xff]
        %v408 = vld [vmem:[#allocation4 + $0xf0] sm:$0xff]
        %v409 = vld [vmem:[#allocation4 + $0xf8] sm:$0xff]
        %v410 = vld [vmem:[#allocation4 + $0x100] sm:$0xff]
        %v411 = vld [vmem:[#allocation4 + $0x108] sm:$0xff]
        %v412 = vld [vmem:[#allocation4 + $0x110] sm:$0xff]
        %v413 = vld [vmem:[#allocation4 + $0x118] sm:$0xff]
        %v414 = vld [vmem:[#allocation4 + $0x120] sm:$0xff]
        %v415 = vld [vmem:[#allocation4 + $0x128] sm:$0xff]
        %v416 = vld [vmem:[#allocation4 + $0x130] sm:$0xff]
        %v417 = vld [vmem:[#allocation4 + $0x138] sm:$0xff]
        %v418 = vld [vmem:[#allocation4 + $0x140] sm:$0xff]
        %v419 = vld [vmem:[#allocation4 + $0x148] sm:$0xff]
        %v420 = vld [vmem:[#allocation4 + $0x150] sm:$0xff]
        %v421 = vld [vmem:[#allocation4 + $0x158] sm:$0xff]
        %v422 = vld [vmem:[#allocation4 + $0x160] sm:$0xff]
        %v423 = vld [vmem:[#allocation4 + $0x168] sm:$0xff]
        %v424 = vld [vmem:[#allocation4 + $0x170] sm:$0xff]
        %v425 = vld [vmem:[#allocation4 + $0x178] sm:$0xff]
        %v426 = vld [vmem:[#allocation4 + $0x180] sm:$0xff]
        %v427 = vld [vmem:[#allocation4 + $0x188] sm:$0xff]
        %v428 = vld [vmem:[#allocation4 + $0x190] sm:$0xff]
        %v429 = vld [vmem:[#allocation4 + $0x198] sm:$0xff]
        %v430 = vld [vmem:[#allocation4 + $0x1a0] sm:$0xff]
        %v431 = vld [vmem:[#allocation4 + $0x1a8] sm:$0xff]
        %v432 = vld [vmem:[#allocation4 + $0x1b0] sm:$0xff]
        %v433 = vld [vmem:[#allocation4 + $0x1b8] sm:$0xff]
        %v434 = vld [vmem:[#allocation4 + $0x1c0] sm:$0xff]
        %v435 = vld [vmem:[#allocation4 + $0x1c8] sm:$0xff]
        %v436 = vld [vmem:[#allocation4 + $0x1d0] sm:$0xff]
        %v437 = vld [vmem:[#allocation4 + $0x1d8] sm:$0xff]
        %v438 = vld [vmem:[#allocation4 + $0x1e0] sm:$0xff]
        %v439 = vld [vmem:[#allocation4 + $0x1e8] sm:$0xff]
        %v440 = vld [vmem:[#allocation4 + $0x1f0] sm:$0xff]
        %v441 = vld [vmem:[#allocation4 + $0x1f8] sm:$0xff]
        %v442 = vld [vmem:[#allocation4 + $0x200] sm:$0xff]
        %v443 = vld [vmem:[#allocation4 + $0x208] sm:$0xff]
        %v444 = vld [vmem:[#allocation4 + $0x210] sm:$0xff]
        %v445 = vld [vmem:[#allocation4 + $0x218] sm:$0xff]
        %v446 = vld [vmem:[#allocation4 + $0x220] sm:$0xff]
        %v447 = vld [vmem:[#allocation4 + $0x228] sm:$0xff]
        %v448 = vld [vmem:[#allocation4 + $0x230] sm:$0xff]
        %v449 = vld [vmem:[#allocation4 + $0x238] sm:$0xff]
        %v450 = vld [vmem:[#allocation4 + $0x240] sm:$0xff]
        %v451 = vld [vmem:[#allocation4 + $0x248] sm:$0xff]
        %v452 = vld [vmem:[#allocation4 + $0x250] sm:$0xff]
        %v453 = vld [vmem:[#allocation4 + $0x258] sm:$0xff]
        %v454 = vld [vmem:[#allocation4 + $0x260] sm:$0xff]
        %v455 = vld [vmem:[#allocation4 + $0x268] sm:$0xff]
        %v456 = vld [vmem:[#allocation4 + $0x270] sm:$0xff]
        %v457 = vld [vmem:[#allocation4 + $0x278] sm:$0xff]
        %v458 = vld [vmem:[#allocation4 + $0x280] sm:$0xff]
        %v459 = vld [vmem:[#allocation4 + $0x288] sm:$0xff]
        %v460 = vld [vmem:[#allocation4 + $0x290] sm:$0xff]
        %v461 = vld [vmem:[#allocation4 + $0x298] sm:$0xff]
        %v462 = vld [vmem:[#allocation4 + $0x2a0] sm:$0xff]
        %v463 = vld [vmem:[#allocation4 + $0x2a8] sm:$0xff]
        %v464 = vld [vmem:[#allocation4 + $0x2b0] sm:$0xff]
        %v465 = vld [vmem:[#allocation4 + $0x2b8] sm:$0xff]
        %v466 = vld [vmem:[#allocation4 + $0x2c0] sm:$0xff]
        %v467 = vld [vmem:[#allocation4 + $0x2c8] sm:$0xff]
        %v468 = vld [vmem:[#allocation4 + $0x2d0] sm:$0xff]
        %v469 = vld [vmem:[#allocation4 + $0x2d8] sm:$0xff]
        %v470 = vld [vmem:[#allocation4 + $0x2e0] sm:$0xff]
        %v471 = vld [vmem:[#allocation4 + $0x2e8] sm:$0xff]
        %v472 = vld [vmem:[#allocation4 + $0x2f0] sm:$0xff]
        %v473 = vld [vmem:[#allocation4 + $0x2f8] sm:$0xff]
        %v474 = vld [vmem:[%s3] sm:$0x3]
        %v476 = vlaneseq
        %v477 = vshrl.u32 %v476, 7
        %v478 = vsub.s32 0, %v477
        %v479 = vrot.slane %v474, %v478
        %v480 = vlaneseq
        %v481 = vshrl.u32 %v480, 7
        %v482 = vsub.s32 1, %v481
        %v483 = vrot.slane %v474, %v482
        %486 = vmatprep.subr.mxu0 %v409
        %487 = vmatpush1.msra.mxu0 %v408
        %488 = vmatprep.subr.mxu0 %v407
        %489 = vmatpush1.msra.mxu0 %v406
        %490 = vmatprep.subr.mxu0 %v405
        %491 = vmatpush1.msra.mxu0 %v404
        %492 = vmatprep.subr.mxu0 %v403
        %493 = vmatpush1.msra.mxu0 %v402
        %494 = vmatprep.subr.mxu0 %v401
        %495 = vmatpush1.msra.mxu0 %v400
        %496 = vmatprep.subr.mxu0 %v399
        %497 = vmatpush1.msra.mxu0 %v398
        %498 = vmatprep.subr.mxu0 %v397
        %499 = vmatpush1.msra.mxu0 %v396
        %500 = vmatprep.subr.mxu0 %v395
        %501 = vmatpush1.msra.mxu0 %v394
        %502 = vmatprep.subr.mxu0 %v393
        %503 = vmatpush1.msra.mxu0 %v392
        %504 = vmatprep.subr.mxu0 %v391
        %505 = vmatpush1.msra.mxu0 %v390
        %506 = vmatprep.subr.mxu0 %v389
        %507 = vmatpush1.msra.mxu0 %v388
        %508 = vmatprep.subr.mxu0 %v387
        %509 = vmatpush1.msra.mxu0 %v386
        %510 = vmatprep.subr.mxu0 %v385
        %511 = vmatpush1.msra.mxu0 %v384
        %512 = vmatprep.subr.mxu0 %v383
        %513 = vmatpush1.msra.mxu0 %v382
        %514 = vmatprep.subr.mxu0 %v381
        %515 = vmatpush1.msra.mxu0 %v380
        %516 = vmatprep.subr.mxu0 %v379
        %517 = vmatpush1.msra.mxu0 %v378
        %518 = vmatprep.subr.mxu0 %v441
        %519 = vmatpush2.msra.mxu0 %v440
        %520 = vmatprep.subr.mxu0 %v439
        %521 = vmatpush2.msra.mxu0 %v438
        %522 = vmatprep.subr.mxu0 %v437
        %523 = vmatpush2.msra.mxu0 %v436
        %524 = vmatprep.subr.mxu0 %v435
        %525 = vmatpush2.msra.mxu0 %v434
        %526 = vmatprep.subr.mxu0 %v433
        %527 = vmatpush2.msra.mxu0 %v432
        %528 = vmatprep.subr.mxu0 %v431
        %529 = vmatpush2.msra.mxu0 %v430
        %530 = vmatprep.subr.mxu0 %v429
        %531 = vmatpush2.msra.mxu0 %v428
        %532 = vmatprep.subr.mxu0 %v427
        %533 = vmatpush2.msra.mxu0 %v426
        %534 = vmatprep.subr.mxu0 %v425
        %535 = vmatpush2.msra.mxu0 %v424
        %536 = vmatprep.subr.mxu0 %v423
        %537 = vmatpush2.msra.mxu0 %v422
        %538 = vmatprep.subr.mxu0 %v421
        %539 = vmatpush2.msra.mxu0 %v420
        %540 = vmatprep.subr.mxu0 %v419
        %541 = vmatpush2.msra.mxu0 %v418
        %542 = vmatprep.subr.mxu0 %v417
        %543 = vmatpush2.msra.mxu0 %v416
        %544 = vmatprep.subr.mxu0 %v415
        %545 = vmatpush2.msra.mxu0 %v414
        %546 = vmatprep.subr.mxu0 %v413
        %547 = vmatpush2.msra.mxu0 %v412
        %548 = vmatprep.subr.mxu0 %v411
        %549 = vmatpush2.msra.mxu0 %v410
        %550 = vmatprep.mubr.f32.mxu0 %v360
        %551 = vmatmul.mubr.f32.gmra.mxu0 %v368
        %v552 = vpop.f32.mrf.mxu0
        %v553 = vadd.f32 %v479, %v552
        %v554 = vpop.f32.mrf.mxu0
        %v555 = vadd.f32 %v483, %v554
        %556 = vdwg.mxu0
        %557 = vmatprep.subr.mxu0 %v473
        %558 = vmatpush1.msra.mxu0 %v472
        %559 = vmatprep.subr.mxu0 %v471
        %560 = vmatpush1.msra.mxu0 %v470
        %561 = vmatprep.subr.mxu0 %v469
        %562 = vmatpush1.msra.mxu0 %v468
        %563 = vmatprep.subr.mxu0 %v467
        %564 = vmatpush1.msra.mxu0 %v466
        %565 = vmatprep.subr.mxu0 %v465
        %566 = vmatpush1.msra.mxu0 %v464
        %567 = vmatprep.subr.mxu0 %v463
        %568 = vmatpush1.msra.mxu0 %v462
        %569 = vmatprep.subr.mxu0 %v461
        %570 = vmatpush1.msra.mxu0 %v460
        %571 = vmatprep.subr.mxu0 %v459
        %572 = vmatpush1.msra.mxu0 %v458
        %573 = vmatprep.subr.mxu0 %v457
        %574 = vmatpush1.msra.mxu0 %v456
        %575 = vmatprep.subr.mxu0 %v455
        %576 = vmatpush1.msra.mxu0 %v454
        %577 = vmatprep.subr.mxu0 %v453
        %578 = vmatpush1.msra.mxu0 %v452
        %579 = vmatprep.subr.mxu0 %v451
        %580 = vmatpush1.msra.mxu0 %v450
        %581 = vmatprep.subr.mxu0 %v449
        %582 = vmatpush1.msra.mxu0 %v448
        %583 = vmatprep.subr.mxu0 %v447
        %584 = vmatpush1.msra.mxu0 %v446
        %585 = vmatprep.subr.mxu0 %v445
        %586 = vmatpush1.msra.mxu0 %v444
        %587 = vmatprep.subr.mxu0 %v443
        %588 = vmatpush1.msra.mxu0 %v442
        %589 = vmatprep.subr.mxu0 0.0
        %590 = vmatpush2.msra.mxu0 0.0
        %591 = vmatprep.subr.mxu0 0.0
        %592 = vmatpush2.msra.mxu0 0.0
        %593 = vmatprep.subr.mxu0 0.0
        %594 = vmatpush2.msra.mxu0 0.0
        %595 = vmatprep.subr.mxu0 0.0
        %596 = vmatpush2.msra.mxu0 0.0
        %597 = vmatprep.subr.mxu0 0.0
        %598 = vmatpush2.msra.mxu0 0.0
        %599 = vmatprep.subr.mxu0 0.0
        %600 = vmatpush2.msra.mxu0 0.0
        %601 = vmatprep.subr.mxu0 0.0
        %602 = vmatpush2.msra.mxu0 0.0
        %603 = vmatprep.subr.mxu0 0.0
        %604 = vmatpush2.msra.mxu0 0.0
        %605 = vmatprep.subr.mxu0 0.0
        %606 = vmatpush2.msra.mxu0 0.0
        %607 = vmatprep.subr.mxu0 0.0
        %608 = vmatpush2.msra.mxu0 0.0
        %609 = vmatprep.subr.mxu0 0.0
        %610 = vmatpush2.msra.mxu0 0.0
        %611 = vmatprep.subr.mxu0 0.0
        %612 = vmatpush2.msra.mxu0 0.0
        %613 = vmatprep.subr.mxu0 0.0
        %614 = vmatpush2.msra.mxu0 0.0
        %615 = vmatprep.subr.mxu0 0.0
        %616 = vmatpush2.msra.mxu0 0.0
        %617 = vmatprep.subr.mxu0 0.0
        %618 = vmatpush2.msra.mxu0 0.0
        %619 = vmatprep.subr.mxu0 0.0
        %620 = vmatpush2.msra.mxu0 0.0
        %621 = vmatprep.mubr.f32.mxu0 0.0
        %622 = vmatmul.mubr.f32.gmra.mxu0 %v377
        %v623 = vpop.f32.mrf.mxu0
        %v624 = vadd.f32 %v553, %v623
        %v625 = vpop.f32.mrf.mxu0
        %v626 = vadd.f32 %v555, %v625
        %627 = vdwg.mxu0
        %vm628 = vcmp.ge.f32.partialorder %v624, 0.0
        %vm629 = vcmp.ge.f32.partialorder %v626, 0.0
        %v630 = vld [vmem:[%s4] sm:$0x3]
        %v632 = vlaneseq
        %v633 = vshrl.u32 %v632, 7
        %v634 = vsub.s32 0, %v633
        %v635 = vrot.slane %v630, %v634
        %v636 = vlaneseq
        %v637 = vshrl.u32 %v636, 7
        %v638 = vsub.s32 1, %v637
        %v639 = vrot.slane %v630, %v638
        %v642 = vmul.f32 %v624, %v635
        %v643 = vmul.f32 %v626, %v639
        %v644 = vsel %vm628, %v624, %v642
        %v645 = vsel %vm629, %v626, %v643
        %v646 = vrot.slane %v644, 7
        %v647 = vrot.slane %v645, 7
        %v648 = vmul.f32 %v646, %v366
        %v649 = vmul.f32 %v647, %v366
        %v650 = vrot.slane %v644, 1
        %v651 = vrot.slane %v645, 1
        %v652 = vmul.f32 %v650, %v375
        %v653 = vmul.f32 %v651, %v375
        %v654 = vld [vmem:[#allocation7] sm:$0xff]
        %v655 = vld [vmem:[#allocation7 + $0x8] sm:$0xff]
        %v656 = vld [vmem:[#allocation7 + $0x10] sm:$0xff]
        %v657 = vld [vmem:[#allocation7 + $0x18] sm:$0xff]
        %v658 = vld [vmem:[#allocation7 + $0x20] sm:$0xff]
        %v659 = vld [vmem:[#allocation7 + $0x28] sm:$0xff]
        %v660 = vld [vmem:[#allocation7 + $0x30] sm:$0xff]
        %v661 = vld [vmem:[#allocation7 + $0x38] sm:$0xff]
        %v662 = vld [vmem:[#allocation7 + $0x40] sm:$0xff]
        %v663 = vld [vmem:[#allocation7 + $0x48] sm:$0xff]
        %v664 = vld [vmem:[#allocation7 + $0x50] sm:$0xff]
        %v665 = vld [vmem:[#allocation7 + $0x58] sm:$0xff]
        %v666 = vld [vmem:[#allocation7 + $0x60] sm:$0xff]
        %v667 = vld [vmem:[#allocation7 + $0x68] sm:$0xff]
        %v668 = vld [vmem:[#allocation7 + $0x70] sm:$0xff]
        %v669 = vld [vmem:[#allocation7 + $0x78] sm:$0xff]
        %v670 = vld [vmem:[#allocation7 + $0x80] sm:$0xff]
        %v671 = vld [vmem:[#allocation7 + $0x88] sm:$0xff]
        %v672 = vld [vmem:[#allocation7 + $0x90] sm:$0xff]
        %v673 = vld [vmem:[#allocation7 + $0x98] sm:$0xff]
        %v674 = vld [vmem:[#allocation7 + $0xa0] sm:$0xff]
        %v675 = vld [vmem:[#allocation7 + $0xa8] sm:$0xff]
        %v676 = vld [vmem:[#allocation7 + $0xb0] sm:$0xff]
        %v677 = vld [vmem:[#allocation7 + $0xb8] sm:$0xff]
        %v678 = vld [vmem:[#allocation7 + $0xc0] sm:$0xff]
        %v679 = vld [vmem:[#allocation7 + $0xc8] sm:$0xff]
        %v680 = vld [vmem:[#allocation7 + $0xd0] sm:$0xff]
        %v681 = vld [vmem:[#allocation7 + $0xd8] sm:$0xff]
        %v682 = vld [vmem:[#allocation7 + $0xe0] sm:$0xff]
        %v683 = vld [vmem:[#allocation7 + $0xe8] sm:$0xff]
        %v684 = vld [vmem:[#allocation7 + $0xf0] sm:$0xff]
        %v685 = vld [vmem:[#allocation7 + $0xf8] sm:$0xff]
        %v686 = vld [vmem:[#allocation7 + $0x100] sm:$0xff]
        %v687 = vld [vmem:[#allocation7 + $0x108] sm:$0xff]
        %v688 = vld [vmem:[#allocation7 + $0x110] sm:$0xff]
        %v689 = vld [vmem:[#allocation7 + $0x118] sm:$0xff]
        %v690 = vld [vmem:[#allocation7 + $0x120] sm:$0xff]
        %v691 = vld [vmem:[#allocation7 + $0x128] sm:$0xff]
        %v692 = vld [vmem:[#allocation7 + $0x130] sm:$0xff]
        %v693 = vld [vmem:[#allocation7 + $0x138] sm:$0xff]
        %v694 = vld [vmem:[#allocation7 + $0x140] sm:$0xff]
        %v695 = vld [vmem:[#allocation7 + $0x148] sm:$0xff]
        %v696 = vld [vmem:[#allocation7 + $0x150] sm:$0xff]
        %v697 = vld [vmem:[#allocation7 + $0x158] sm:$0xff]
        %v698 = vld [vmem:[#allocation7 + $0x160] sm:$0xff]
        %v699 = vld [vmem:[#allocation7 + $0x168] sm:$0xff]
        %v700 = vld [vmem:[#allocation7 + $0x170] sm:$0xff]
        %v701 = vld [vmem:[#allocation7 + $0x178] sm:$0xff]
        %v702 = vld [vmem:[#allocation7 + $0x180] sm:$0xff]
        %v703 = vld [vmem:[#allocation7 + $0x188] sm:$0xff]
        %v704 = vld [vmem:[#allocation7 + $0x190] sm:$0xff]
        %v705 = vld [vmem:[#allocation7 + $0x198] sm:$0xff]
        %v706 = vld [vmem:[#allocation7 + $0x1a0] sm:$0xff]
        %v707 = vld [vmem:[#allocation7 + $0x1a8] sm:$0xff]
        %v708 = vld [vmem:[#allocation7 + $0x1b0] sm:$0xff]
        %v709 = vld [vmem:[#allocation7 + $0x1b8] sm:$0xff]
        %v710 = vld [vmem:[#allocation7 + $0x1c0] sm:$0xff]
        %v711 = vld [vmem:[#allocation7 + $0x1c8] sm:$0xff]
        %v712 = vld [vmem:[#allocation7 + $0x1d0] sm:$0xff]
        %v713 = vld [vmem:[#allocation7 + $0x1d8] sm:$0xff]
        %v714 = vld [vmem:[#allocation7 + $0x1e0] sm:$0xff]
        %v715 = vld [vmem:[#allocation7 + $0x1e8] sm:$0xff]
        %v716 = vld [vmem:[#allocation7 + $0x1f0] sm:$0xff]
        %v717 = vld [vmem:[#allocation7 + $0x1f8] sm:$0xff]
        %v718 = vld [vmem:[#allocation7 + $0x200] sm:$0xff]
        %v719 = vld [vmem:[#allocation7 + $0x208] sm:$0xff]
        %v720 = vld [vmem:[#allocation7 + $0x210] sm:$0xff]
        %v721 = vld [vmem:[#allocation7 + $0x218] sm:$0xff]
        %v722 = vld [vmem:[#allocation7 + $0x220] sm:$0xff]
        %v723 = vld [vmem:[#allocation7 + $0x228] sm:$0xff]
        %v724 = vld [vmem:[#allocation7 + $0x230] sm:$0xff]
        %v725 = vld [vmem:[#allocation7 + $0x238] sm:$0xff]
        %v726 = vld [vmem:[#allocation7 + $0x240] sm:$0xff]
        %v727 = vld [vmem:[#allocation7 + $0x248] sm:$0xff]
        %v728 = vld [vmem:[#allocation7 + $0x250] sm:$0xff]
        %v729 = vld [vmem:[#allocation7 + $0x258] sm:$0xff]
        %v730 = vld [vmem:[#allocation7 + $0x260] sm:$0xff]
        %v731 = vld [vmem:[#allocation7 + $0x268] sm:$0xff]
        %v732 = vld [vmem:[#allocation7 + $0x270] sm:$0xff]
        %v733 = vld [vmem:[#allocation7 + $0x278] sm:$0xff]
        %v734 = vld [vmem:[#allocation7 + $0x280] sm:$0xff]
        %v735 = vld [vmem:[#allocation7 + $0x288] sm:$0xff]
        %v736 = vld [vmem:[#allocation7 + $0x290] sm:$0xff]
        %v737 = vld [vmem:[#allocation7 + $0x298] sm:$0xff]
        %v738 = vld [vmem:[#allocation7 + $0x2a0] sm:$0xff]
        %v739 = vld [vmem:[#allocation7 + $0x2a8] sm:$0xff]
        %v740 = vld [vmem:[#allocation7 + $0x2b0] sm:$0xff]
        %v741 = vld [vmem:[#allocation7 + $0x2b8] sm:$0xff]
        %v742 = vld [vmem:[#allocation7 + $0x2c0] sm:$0xff]
        %v743 = vld [vmem:[#allocation7 + $0x2c8] sm:$0xff]
        %v744 = vld [vmem:[#allocation7 + $0x2d0] sm:$0xff]
        %v745 = vld [vmem:[#allocation7 + $0x2d8] sm:$0xff]
        %v746 = vld [vmem:[#allocation7 + $0x2e0] sm:$0xff]
        %v747 = vld [vmem:[#allocation7 + $0x2e8] sm:$0xff]
        %v748 = vld [vmem:[#allocation7 + $0x2f0] sm:$0xff]
        %v749 = vld [vmem:[#allocation7 + $0x2f8] sm:$0xff]
        %v750 = vld [vmem:[%s6] sm:$0x1]
        %v752 = vlaneseq
        %v753 = vshrl.u32 %v752, 7
        %v754 = vsub.s32 0, %v753
        %v755 = vrot.slane %v750, %v754
        %757 = vmatprep.subr.mxu0 0.0
        %758 = vmatpush1.msra.mxu0 %v669
        %759 = vmatprep.subr.mxu0 0.0
        %760 = vmatpush1.msra.mxu0 %v668
        %761 = vmatprep.subr.mxu0 0.0
        %762 = vmatpush1.msra.mxu0 %v667
        %763 = vmatprep.subr.mxu0 0.0
        %764 = vmatpush1.msra.mxu0 %v666
        %765 = vmatprep.subr.mxu0 0.0
        %766 = vmatpush1.msra.mxu0 %v665
        %767 = vmatprep.subr.mxu0 0.0
        %768 = vmatpush1.msra.mxu0 %v664
        %769 = vmatprep.subr.mxu0 0.0
        %770 = vmatpush1.msra.mxu0 %v663
        %771 = vmatprep.subr.mxu0 0.0
        %772 = vmatpush1.msra.mxu0 %v662
        %773 = vmatprep.subr.mxu0 0.0
        %774 = vmatpush1.msra.mxu0 %v661
        %775 = vmatprep.subr.mxu0 0.0
        %776 = vmatpush1.msra.mxu0 %v660
        %777 = vmatprep.subr.mxu0 0.0
        %778 = vmatpush1.msra.mxu0 %v659
        %779 = vmatprep.subr.mxu0 0.0
        %780 = vmatpush1.msra.mxu0 %v658
        %781 = vmatprep.subr.mxu0 0.0
        %782 = vmatpush1.msra.mxu0 %v657
        %783 = vmatprep.subr.mxu0 0.0
        %784 = vmatpush1.msra.mxu0 %v656
        %785 = vmatprep.subr.mxu0 0.0
        %786 = vmatpush1.msra.mxu0 %v655
        %787 = vmatprep.subr.mxu0 0.0
        %788 = vmatpush1.msra.mxu0 %v654
        %789 = vmatprep.subr.mxu0 0.0
        %790 = vmatpush2.msra.mxu0 %v685
        %791 = vmatprep.subr.mxu0 0.0
        %792 = vmatpush2.msra.mxu0 %v684
        %793 = vmatprep.subr.mxu0 0.0
        %794 = vmatpush2.msra.mxu0 %v683
        %795 = vmatprep.subr.mxu0 0.0
        %796 = vmatpush2.msra.mxu0 %v682
        %797 = vmatprep.subr.mxu0 0.0
        %798 = vmatpush2.msra.mxu0 %v681
        %799 = vmatprep.subr.mxu0 0.0
        %800 = vmatpush2.msra.mxu0 %v680
        %801 = vmatprep.subr.mxu0 0.0
        %802 = vmatpush2.msra.mxu0 %v679
        %803 = vmatprep.subr.mxu0 0.0
        %804 = vmatpush2.msra.mxu0 %v678
        %805 = vmatprep.subr.mxu0 0.0
        %806 = vmatpush2.msra.mxu0 %v677
        %807 = vmatprep.subr.mxu0 0.0
        %808 = vmatpush2.msra.mxu0 %v676
        %809 = vmatprep.subr.mxu0 0.0
        %810 = vmatpush2.msra.mxu0 %v675
        %811 = vmatprep.subr.mxu0 0.0
        %812 = vmatpush2.msra.mxu0 %v674
        %813 = vmatprep.subr.mxu0 0.0
        %814 = vmatpush2.msra.mxu0 %v673
        %815 = vmatprep.subr.mxu0 0.0
        %816 = vmatpush2.msra.mxu0 %v672
        %817 = vmatprep.subr.mxu0 0.0
        %818 = vmatpush2.msra.mxu0 %v671
        %819 = vmatprep.subr.mxu0 0.0
        %820 = vmatpush2.msra.mxu0 %v670
        %821 = vmatprep.mubr.f32.mxu0 %v649
        %822 = vmatmul.mubr.f32.gmra.mxu0 %v648
        %v823 = vpop.f32.mrf.mxu0
        %v824 = vadd.f32 %v755, %v823
        %v825 = vpop.f32.mrf.mxu0
        %826 = vdwg.mxu0
        %827 = vmatprep.subr.mxu0 0.0
        %828 = vmatpush1.msra.mxu0 %v701
        %829 = vmatprep.subr.mxu0 0.0
        %830 = vmatpush1.msra.mxu0 %v700
        %831 = vmatprep.subr.mxu0 0.0
        %832 = vmatpush1.msra.mxu0 %v699
        %833 = vmatprep.subr.mxu0 0.0
        %834 = vmatpush1.msra.mxu0 %v698
        %835 = vmatprep.subr.mxu0 0.0
        %836 = vmatpush1.msra.mxu0 %v697
        %837 = vmatprep.subr.mxu0 0.0
        %838 = vmatpush1.msra.mxu0 %v696
        %839 = vmatprep.subr.mxu0 0.0
        %840 = vmatpush1.msra.mxu0 %v695
        %841 = vmatprep.subr.mxu0 0.0
        %842 = vmatpush1.msra.mxu0 %v694
        %843 = vmatprep.subr.mxu0 0.0
        %844 = vmatpush1.msra.mxu0 %v693
        %845 = vmatprep.subr.mxu0 0.0
        %846 = vmatpush1.msra.mxu0 %v692
        %847 = vmatprep.subr.mxu0 0.0
        %848 = vmatpush1.msra.mxu0 %v691
        %849 = vmatprep.subr.mxu0 0.0
        %850 = vmatpush1.msra.mxu0 %v690
        %851 = vmatprep.subr.mxu0 0.0
        %852 = vmatpush1.msra.mxu0 %v689
        %853 = vmatprep.subr.mxu0 0.0
        %854 = vmatpush1.msra.mxu0 %v688
        %855 = vmatprep.subr.mxu0 0.0
        %856 = vmatpush1.msra.mxu0 %v687
        %857 = vmatprep.subr.mxu0 0.0
        %858 = vmatpush1.msra.mxu0 %v686
        %859 = vmatprep.subr.mxu0 0.0
        %860 = vmatpush2.msra.mxu0 %v717
        %861 = vmatprep.subr.mxu0 0.0
        %862 = vmatpush2.msra.mxu0 %v716
        %863 = vmatprep.subr.mxu0 0.0
        %864 = vmatpush2.msra.mxu0 %v715
        %865 = vmatprep.subr.mxu0 0.0
        %866 = vmatpush2.msra.mxu0 %v714
        %867 = vmatprep.subr.mxu0 0.0
        %868 = vmatpush2.msra.mxu0 %v713
        %869 = vmatprep.subr.mxu0 0.0
        %870 = vmatpush2.msra.mxu0 %v712
        %871 = vmatprep.subr.mxu0 0.0
        %872 = vmatpush2.msra.mxu0 %v711
        %873 = vmatprep.subr.mxu0 0.0
        %874 = vmatpush2.msra.mxu0 %v710
        %875 = vmatprep.subr.mxu0 0.0
        %876 = vmatpush2.msra.mxu0 %v709
        %877 = vmatprep.subr.mxu0 0.0
        %878 = vmatpush2.msra.mxu0 %v708
        %879 = vmatprep.subr.mxu0 0.0
        %880 = vmatpush2.msra.mxu0 %v707
        %881 = vmatprep.subr.mxu0 0.0
        %882 = vmatpush2.msra.mxu0 %v706
        %883 = vmatprep.subr.mxu0 0.0
        %884 = vmatpush2.msra.mxu0 %v705
        %885 = vmatprep.subr.mxu0 0.0
        %886 = vmatpush2.msra.mxu0 %v704
        %887 = vmatprep.subr.mxu0 0.0
        %888 = vmatpush2.msra.mxu0 %v703
        %889 = vmatprep.subr.mxu0 0.0
        %890 = vmatpush2.msra.mxu0 %v702
        %891 = vmatprep.mubr.f32.mxu0 %v645
        %892 = vmatmul.mubr.f32.gmra.mxu0 %v644
        %v893 = vpop.f32.mrf.mxu0
        %v894 = vadd.f32 %v824, %v893
        %v895 = vpop.f32.mrf.mxu0
        %896 = vdwg.mxu0
        %897 = vmatprep.subr.mxu0 0.0
        %898 = vmatpush1.msra.mxu0 %v733
        %899 = vmatprep.subr.mxu0 0.0
        %900 = vmatpush1.msra.mxu0 %v732
        %901 = vmatprep.subr.mxu0 0.0
        %902 = vmatpush1.msra.mxu0 %v731
        %903 = vmatprep.subr.mxu0 0.0
        %904 = vmatpush1.msra.mxu0 %v730
        %905 = vmatprep.subr.mxu0 0.0
        %906 = vmatpush1.msra.mxu0 %v729
        %907 = vmatprep.subr.mxu0 0.0
        %908 = vmatpush1.msra.mxu0 %v728
        %909 = vmatprep.subr.mxu0 0.0
        %910 = vmatpush1.msra.mxu0 %v727
        %911 = vmatprep.subr.mxu0 0.0
        %912 = vmatpush1.msra.mxu0 %v726
        %913 = vmatprep.subr.mxu0 0.0
        %914 = vmatpush1.msra.mxu0 %v725
        %915 = vmatprep.subr.mxu0 0.0
        %916 = vmatpush1.msra.mxu0 %v724
        %917 = vmatprep.subr.mxu0 0.0
        %918 = vmatpush1.msra.mxu0 %v723
        %919 = vmatprep.subr.mxu0 0.0
        %920 = vmatpush1.msra.mxu0 %v722
        %921 = vmatprep.subr.mxu0 0.0
        %922 = vmatpush1.msra.mxu0 %v721
        %923 = vmatprep.subr.mxu0 0.0
        %924 = vmatpush1.msra.mxu0 %v720
        %925 = vmatprep.subr.mxu0 0.0
        %926 = vmatpush1.msra.mxu0 %v719
        %927 = vmatprep.subr.mxu0 0.0
        %928 = vmatpush1.msra.mxu0 %v718
        %929 = vmatprep.subr.mxu0 0.0
        %930 = vmatpush2.msra.mxu0 %v749
        %931 = vmatprep.subr.mxu0 0.0
        %932 = vmatpush2.msra.mxu0 %v748
        %933 = vmatprep.subr.mxu0 0.0
        %934 = vmatpush2.msra.mxu0 %v747
        %935 = vmatprep.subr.mxu0 0.0
        %936 = vmatpush2.msra.mxu0 %v746
        %937 = vmatprep.subr.mxu0 0.0
        %938 = vmatpush2.msra.mxu0 %v745
        %939 = vmatprep.subr.mxu0 0.0
        %940 = vmatpush2.msra.mxu0 %v744
        %941 = vmatprep.subr.mxu0 0.0
        %942 = vmatpush2.msra.mxu0 %v743
        %943 = vmatprep.subr.mxu0 0.0
        %944 = vmatpush2.msra.mxu0 %v742
        %945 = vmatprep.subr.mxu0 0.0
        %946 = vmatpush2.msra.mxu0 %v741
        %947 = vmatprep.subr.mxu0 0.0
        %948 = vmatpush2.msra.mxu0 %v740
        %949 = vmatprep.subr.mxu0 0.0
        %950 = vmatpush2.msra.mxu0 %v739
        %951 = vmatprep.subr.mxu0 0.0
        %952 = vmatpush2.msra.mxu0 %v738
        %953 = vmatprep.subr.mxu0 0.0
        %954 = vmatpush2.msra.mxu0 %v737
        %955 = vmatprep.subr.mxu0 0.0
        %956 = vmatpush2.msra.mxu0 %v736
        %957 = vmatprep.subr.mxu0 0.0
        %958 = vmatpush2.msra.mxu0 %v735
        %959 = vmatprep.subr.mxu0 0.0
        %960 = vmatpush2.msra.mxu0 %v734
        %961 = vmatprep.mubr.f32.mxu0 %v653
        %962 = vmatmul.mubr.f32.gmra.mxu0 %v652
        %v963 = vpop.f32.mrf.mxu0
        %v964 = vadd.f32 %v894, %v963
        %v965 = vpop.f32.mrf.mxu0
        %966 = vdwg.mxu0
        %s967 = sld [smem:[#allocation2]]
        %v968 = vstv %s967
        %v969 = vmul.f32 %v968, %v360
        %s970 = sld [smem:[#allocation3]]
        %v971 = vstv %s970
        %v972 = vmul.f32 %v971, %v964
        %v973 = vadd.f32 %v969, %v972
        %974 = vst [vmem:[%s355] sm:$0xff] %v973
        %s975 = sand.u32 %s229, 1
        %s976 = scalar_lea.sflag [#allocation6], %s975
        %s977 = sand.u32 %s229, 1
        %s978 = smul.addr %s977, 8
        %s979 = scalar_lea.vmem [#allocation9], %s978
        // Predicated region
        $region65: #{tpu_custom_call.1} parent=55 // pred_check
          %p980 = pneg %p239
        $region66: #{tpu_custom_call.1} parent=55 // pred_check_branch
          %982 = sbr.rel (%p980) target = $region68
        $region67: #{tpu_custom_call.1} parent=55 // pred_region
          %s984 = ssub.s32 128, 128
          %985 = vsyncadd %s976, %s984
          %s986 = smul.addr %s27, 128
          %s987 = scalar_lea.hbm %s9, %s986
          %s989 = sshll.u32 %s979, 4
          %s990 = int_to_ptr.vmem [resolvable:$true] %s989
          %992 = dma.vmem_to_hbm [thread:$0]  %s990, 128, %s987, %s976
        $region68: #{tpu_custom_call.1} parent=55 // pred_fallthru
          _
      $region56: #{tpu_custom_call.1} parent=5 // pred_fallthru
        _
      %p993 = scmp.le.s32.totalorder 2, %s22
      // Predicated region
      $region69: #{tpu_custom_call.1} parent=5 // pred_check
        %p994 = pneg %p993
      $region70: #{tpu_custom_call.1} parent=5 // pred_check_branch
        %996 = sbr.rel (%p994) target = $region72
      $region71: #{tpu_custom_call.1} parent=5 // pred_region
        %s997 = ssub.s32 %s22, 2
        // Predicated region
        $region73: #{tpu_custom_call.1} parent=71 // pred_check
          %p998 = pneg %p245
        $region74: #{tpu_custom_call.1} parent=71 // pred_check_branch
          %1000 = sbr.rel (%p998) target = $region76
        $region75: #{tpu_custom_call.1} parent=71 // pred_region
          %s1001 = sand.u32 %s230, 1
          %s1002 = scalar_lea.sflag [#allocation6], %s1001
          %s1003 = sand.u32 %s230, 1
          %s1004 = smul.addr %s1003, 8
          %s1005 = scalar_lea.vmem [#allocation9], %s1004
          %1006 = dma.done %s1002, 128
        $region76: #{tpu_custom_call.1} parent=71 // pred_fallthru
          _
      $region72: #{tpu_custom_call.1} parent=5 // pred_fallthru
        _
    $region6: #{tpu_custom_call.1} parent=1 // loop_footer
      %s26 = sadd.s32 1, %s22
    $region7: #{tpu_custom_call.1} parent=1 // loop_footer_branch
      %21 = sbr.rel target = $region3
    $region8: #{tpu_custom_call.1} parent=1 // loop_exit
      _
    %1007 = vsyncpa [#allocation5], 1
    %s1008 = scalar_lea.sflag [#allocation5], 1
    %1009 = vsyncpa %s1008, 1
    %1010 = vsyncpa [#allocation8], 1
    %1011 = vsyncpa [#allocation6], 1
    %s1012 = scalar_lea.sflag [#allocation6], 1
    %1013 = vsyncpa %s1012, 1

</llo_original>
